<compile_context>
chip_gen: v7x
topology: tpu7x:2x2x1
jax: 0.10.0
libtpu: 0.0.40
codegen_flags: <defaults>
</compile_context>

<pallas_src>
import numpy as np
import jax
import jax.numpy as jnp
from jax.experimental import pallas as pl
from jax.experimental.pallas import tpu as pltpu

WEIGHT_DTYPE = jnp.bfloat16   # per-feature weights streamed in bf16, f32 accumulation
ACT_DTYPE = jnp.bfloat16      # activations handed to the kernels
LOGITS_DTYPE = jnp.bfloat16   # padded logits slab (accumulate f32, store bf16)
_BATCH_ALIGN = 16             # bf16 sublane packing


def _silu(v):
    return v * jax.nn.sigmoid(v)


def _round_up(x, m):
    return (x + m - 1) // m * m


def _pow2_floor(x):
    x = int(x)
    return 1 << (x.bit_length() - 1) if x >= 1 else 1


def _tpu_hw_info():
    """Generation-aware sizing (VMEM capacity, MXU lane target)."""
    kind = ""
    try:
        kind = jax.devices()[0].device_kind.lower()
    except Exception:
        pass
    vmem = None
    try:
        info = pltpu.get_tpu_info()
        for attr in ("vmem_capacity_bytes", "vmem_bytes"):
            v = getattr(info, attr, None)
            if v:
                vmem = int(v)
                break
    except Exception:
        vmem = None
    is_v7x = "7" in kind
    if vmem is None:
        vmem = (64 if is_v7x else 128) * 2**20
    lane_target = 128 if "v5" in kind else 256     # v5e MXU is 128 wide; v6e/v7x are 256
    return {"device_kind": kind, "vmem_bytes": vmem,
            "lane_target": lane_target, "is_v7x": is_v7x}


# ----------------------------------------------------------------------------
# Kernel 1: cond_map MLP  (B_t, Fc*E) bf16 -> (B_t, cond_dim) bf16
# ----------------------------------------------------------------------------
def cond_map_kernel(x_ref, w1_ref, b1_ref, w2_ref, b2_ref, o_ref):
    h = jnp.dot(x_ref[...], w1_ref[...], preferred_element_type=jnp.float32) + b1_ref[...]
    h = _silu(h)                                                       # f32 VPU
    h = jnp.dot(h.astype(w2_ref.dtype), w2_ref[...],
                preferred_element_type=jnp.float32) + b2_ref[...]
    o_ref[...] = _silu(h).astype(o_ref.dtype)


def cond_map_pallas(cond_emb, w1, b1, w2, b2, *, b_tile):
    B_pad, FcE = cond_emb.shape
    cond_dim = w1.shape[1]
    nb = B_pad // b_tile
    return pl.pallas_call(
        cond_map_kernel,
        out_shape=jax.ShapeDtypeStruct((B_pad, cond_dim), ACT_DTYPE),
        grid=(nb,),
        in_specs=[
            pl.BlockSpec((b_tile, FcE), lambda i: (i, 0)),
            pl.BlockSpec((FcE, cond_dim), lambda i: (0, 0)),
            pl.BlockSpec((1, cond_dim), lambda i: (0, 0)),
            pl.BlockSpec((cond_dim, cond_dim), lambda i: (0, 0)),
            pl.BlockSpec((1, cond_dim), lambda i: (0, 0)),
        ],
        out_specs=pl.BlockSpec((b_tile, cond_dim), lambda i: (i, 0)),
        compiler_params=pltpu.CompilerParams(dimension_semantics=("parallel",)),
    )(cond_emb, w1, b1, w2, b2)


# ----------------------------------------------------------------------------
# Kernel 2: processor + predictors for one (feature group, batch tile) grid step.
# Three dense matmuls; mask/cat_bias pre-folded into W1e/B1; W2/WP block-diagonal
# over the F_b features of the group.  Inputs are already bf16 (no in-kernel casts
# of the resident activation streams).
# ----------------------------------------------------------------------------
def argn_block_kernel(base_ref, cond_ref, w1e_ref, w1c_ref, b1_ref,
                      w2_ref, b2_ref, wp_ref, bp_ref, out_ref):
    wdt = w1e_ref.dtype
    h1 = (jnp.dot(base_ref[...], w1e_ref[0], preferred_element_type=jnp.float32)
          + jnp.dot(cond_ref[...], w1c_ref[0], preferred_element_type=jnp.float32)
          + b1_ref[0])                                                 # (B_t, F_b*2E) f32
    h1 = _silu(h1)
    h2 = jnp.dot(h1.astype(wdt), w2_ref[0],
                 preferred_element_type=jnp.float32) + b2_ref[0]       # (B_t, F_b*E)
    h2 = _silu(h2)
    out = jnp.dot(h2.astype(wdt), wp_ref[0],
                  preferred_element_type=jnp.float32) + bp_ref[0]      # (B_t, F_b*Cpad)
    out_ref[...] = out.astype(out_ref.dtype)                           # bf16 store


def argn_processor_pallas(base_flat, cond_feat, pk, *, b_tile, hw):
    B_pad, FE = base_flat.shape
    cond_dim = cond_feat.shape[1]
    G = pk["G"]
    n1 = pk["W1e"].shape[2]       # F_b * 2E
    e_b = pk["W2"].shape[2]       # F_b * E
    c_b = pk["WP"].shape[2]       # F_b * Cpad   (multiple of 128)
    nb = B_pad // b_tile

    # Generation-aware VMEM limit: ~75% of capacity, capped at 96 MiB (=> ~48 MiB on v7x).
    vmem_limit = int(min(96 * 2**20, max(32 * 2**20, int(0.75 * hw["vmem_bytes"]))))

    # Deeper weight buffering only pays when the weight index changes every grid step
    # (nb == 1) and there are enough groups to pipeline; skip on v7x (64 MiB VMEM).
    wbuf = 3 if (nb == 1 and G >= 3 and not hw["is_v7x"]) else 0

    wmap = lambda fi, bi: (fi, 0, 0)

    def wspec(k, n, nbuf):
        if nbuf and nbuf > 2 and hasattr(pl, "Buffered"):
            try:
                return pl.BlockSpec((1, k, n), wmap, pipeline_mode=pl.Buffered(nbuf))
            except Exception:
                pass
        return pl.BlockSpec((1, k, n), wmap)

    bspec = lambda d: pl.BlockSpec((b_tile, d), lambda fi, bi: (bi, 0))

    return pl.pallas_call(
        argn_block_kernel,
        out_shape=jax.ShapeDtypeStruct((B_pad, G * c_b), LOGITS_DTYPE),
        # Feature groups OUTER, batch tiles INNER: weights are streamed from HBM at
        # most once and stay resident across batch tiles; only base/cond re-fetch.
        grid=(G, nb),
        in_specs=[
            bspec(FE),                       # base embeddings, bf16
            bspec(cond_dim),                 # cond features, bf16
            wspec(FE, n1, wbuf),             # layer-1 weight (mask folded in), bf16
            wspec(cond_dim, n1, wbuf),       # layer-1 cond weight, bf16
            wspec(1, n1, 0),                 # layer-1 bias (cat_bias folded in), f32
            wspec(n1, e_b, wbuf),            # layer-2 block-diagonal weight, bf16
            wspec(1, e_b, 0),                # layer-2 bias, f32
            wspec(e_b, c_b, wbuf),           # predictor block-diagonal weight, bf16
            wspec(1, c_b, 0),                # predictor bias, f32
        ],
        out_specs=pl.BlockSpec((b_tile, c_b), lambda fi, bi: (bi, fi)),
        compiler_params=pltpu.CompilerParams(
            # Both parallel: on v7x the outer (feature-group) axis is sharded across
            # the 2 TCs, so each TC streams a disjoint half of the weights.
            dimension_semantics=("parallel", "parallel"),
            vmem_limit_bytes=vmem_limit),
    )(base_flat, cond_feat, pk["W1e"], pk["W1c"], pk["B1"],
      pk["W2"], pk["B2"], pk["WP"], pk["BP"])


# ----------------------------------------------------------------------------
# Offline weight packing: fold mask/cat_bias, stack F_b features per group,
# block-diagonal layer-2 / predictor weights, pad classes, cast to bf16.
# ----------------------------------------------------------------------------
def pack_processor_params(p, weight_dtype=WEIGHT_DTYPE, lane_target=256):
    F, E = p["num_features"], p["emb_dim"]
    FE, two_e = F * E, 2 * E
    cond_dim = p["cm_w1"].shape[1]
    Cmax = p["wp"].shape[2]

    # F_b: power of two (divides 128 => Cpad stays near Cmax and F_b*Cpad % 128 == 0),
    # sized so the packed layer-1 output width F_b*2E targets the MXU N dim.
    cap = max(1, lane_target // max(1, two_e))
    F_b = min(128, _pow2_floor(max(1, min(cap, F))))
    F_pad = _round_up(F, F_b)
    G = F_pad // F_b
    step = 128 // F_b
    Cpad = _round_up(Cmax, step)

    mask = np.asarray(p["mask_flat"], np.float32).reshape(F, FE)
    cat_bias = np.asarray(p["cat_bias"], np.float32).reshape(F, FE)
    w1a = np.asarray(p["w1a"], np.float32)
    w1b = np.asarray(p["w1b"], np.float32)
    b1 = np.asarray(p["b1"], np.float32).reshape(F, two_e)
    w2 = np.asarray(p["w2"], np.float32)
    b2 = np.asarray(p["b2"], np.float32).reshape(F, E)
    wp = np.asarray(p["wp"], np.float32)
    bp = np.asarray(p["bp"], np.float32).reshape(F, Cmax)

    W1e = np.zeros((G, FE, F_b * two_e), np.float32)
    W1c = np.zeros((G, cond_dim, F_b * two_e), np.float32)
    B1 = np.zeros((G, 1, F_b * two_e), np.float32)
    W2 = np.zeros((G, F_b * two_e, F_b * E), np.float32)
    B2 = np.zeros((G, 1, F_b * E), np.float32)
    WP = np.zeros((G, F_b * E, F_b * Cpad), np.float32)
    BP = np.zeros((G, 1, F_b * Cpad), np.float32)

    for f in range(F):
        g, j = divmod(f, F_b)
        # (x*mask + cat_bias) @ W1a  ==  x @ (mask (.) W1a)  +  (cat_bias @ W1a)
        W1e[g, :, j * two_e:(j + 1) * two_e] = mask[f][:, None] * w1a[f]
        W1c[g, :, j * two_e:(j + 1) * two_e] = w1b[f]
        B1[g, 0, j * two_e:(j + 1) * two_e] = b1[f] + cat_bias[f] @ w1a[f]
        W2[g, j * two_e:(j + 1) * two_e, j * E:(j + 1) * E] = w2[f]
        B2[g, 0, j * E:(j + 1) * E] = b2[f]
        WP[g, j * E:(j + 1) * E, j * Cpad:j * Cpad + Cmax] = wp[f]
        BP[g, 0, j * Cpad:j * Cpad + Cmax] = bp[f]

    return {
        "F_b": F_b, "F_pad": F_pad, "G": G, "Cpad": Cpad,
        "W1e": jnp.asarray(W1e, weight_dtype),
        "W1c": jnp.asarray(W1c, weight_dtype),
        "B1": jnp.asarray(B1),
        "W2": jnp.asarray(W2, weight_dtype),
        "B2": jnp.asarray(B2),
        "WP": jnp.asarray(WP, weight_dtype),
        "BP": jnp.asarray(BP),
        # cond_map weights streamed in bf16 too (f32 biases).
        "CM_W1": jnp.asarray(p["cm_w1"], weight_dtype),
        "CM_B1": jnp.asarray(p["cm_b1"], jnp.float32),
        "CM_W2": jnp.asarray(p["cm_w2"], weight_dtype),
        "CM_B2": jnp.asarray(p["cm_b2"], jnp.float32),
    }


# ----------------------------------------------------------------------------
# ARGN forward (glue + kernels)
# ----------------------------------------------------------------------------
def generate_mask(order_idx, F):
    idx = jnp.argsort(order_idx)
    m = jnp.tril(jnp.ones((F, F), jnp.int32), k=-1)
    return m[idx][:, idx]                          # (F, F)


def _choose_batch_tile(B, pk, FE, cond_dim, hw):
    """Prefer nb == 1 (weights streamed exactly once) within a generation-aware VMEM budget."""
    wbytes = jnp.dtype(pk["W1e"].dtype).itemsize
    abytes = jnp.dtype(ACT_DTYPE).itemsize
    obytes = jnp.dtype(LOGITS_DTYPE).itemsize
    n1, e_b, c_b = pk["W1e"].shape[2], pk["W2"].shape[2], pk["WP"].shape[2]
    w_block = ((FE + cond_dim) * n1 + n1 * e_b + e_b * c_b) * wbytes + (n1 + e_b + c_b) * 4
    budget = int(0.6 * hw["vmem_bytes"]) - 3 * w_block          # assume 3 weight buffers
    per_row = (2 * (FE + cond_dim) * abytes                     # double-buffered activations
               + 2 * c_b * obytes                               # double-buffered out tile
               + 2 * (n1 + e_b) * 4)                            # f32 h1/h2 intermediates
    max_rows = max(_BATCH_ALIGN,
                   (budget // max(1, per_row)) // _BATCH_ALIGN * _BATCH_ALIGN)
    b_pad = _round_up(B, _BATCH_ALIGN)
    if b_pad <= max_rows:
        return b_pad, b_pad                                     # nb == 1
    b_tile = max(_BATCH_ALIGN, min(512, max_rows) // _BATCH_ALIGN * _BATCH_ALIGN)
    return _round_up(B, b_tile), b_tile


def argn_forward(params, x, cond, *, b_tile_override=None):
    """Returns padded logits (B, F, Cpad) in LOGITS_DTYPE.

    Consumers MUST slice feature i to n_classes[i] before softmax/argmax; padded
    class columns carry exactly-zero logits.
    """
    p = params
    pk = p["packed"]
    hw = p["hw"]
    F, E = p["num_features"], p["emb_dim"]
    B = x.shape[0]
    Fc = len(p["n_cond_classes"])
    cond_dim = pk["CM_W1"].shape[1]

    # TODO(synk): embedding-table gathers are left to XLA (no rectangular BlockSpec for them).
    base_flat = p["emb_table"][x + p["cat_offset"]].reshape(B, F * E).astype(ACT_DTYPE)
    cond_emb = p["cond_emb_table"][cond + p["cond_offset"]].reshape(B, Fc * E).astype(ACT_DTYPE)

    if b_tile_override is not None:
        b_tile = _round_up(int(b_tile_override), _BATCH_ALIGN)
        B_pad = _round_up(B, b_tile)
    else:
        B_pad, b_tile = _choose_batch_tile(B, pk, F * E, cond_dim, hw)
    if B_pad != B:
        base_flat = jnp.pad(base_flat, ((0, B_pad - B), (0, 0)))
        cond_emb = jnp.pad(cond_emb, ((0, B_pad - B), (0, 0)))

    cond_feat = cond_map_pallas(cond_emb, pk["CM_W1"], pk["CM_B1"],
                                pk["CM_W2"], pk["CM_B2"], b_tile=b_tile)   # (B_pad, cond_dim) bf16
    out = argn_processor_pallas(base_flat, cond_feat, pk, b_tile=b_tile, hw=hw)
    return out[:B].reshape(B, pk["F_pad"], pk["Cpad"])[:, :F, :]           # (B, F, Cpad)


# ----------------------------------------------------------------------------
# Pure-JAX references for validation
# ----------------------------------------------------------------------------
def argn_reference(params, x, cond):
    """Mirrors the original (unfolded, f32) PyTorch forward. Returns per-feature list."""
    p = params
    F, E = p["num_features"], p["emb_dim"]
    B = x.shape[0]
    Fc = len(p["n_cond_classes"])
    cond_dim = p["cm_w1"].shape[1]

    base = p["emb_table"][x + p["cat_offset"]].reshape(B, F * E)
    mask = p["mask_flat"][:, 0, :]                                       # (F, F*E)
    x_emb = base[:, None, :] * mask[None] + p["cat_bias"][:, 0, :][None]

    cemb = p["cond_emb_table"][cond + p["cond_offset"]].reshape(B, Fc * E)
    h = _silu(cemb @ p["cm_w1"] + p["cm_b1"])
    cf = _silu(h @ p["cm_w2"] + p["cm_b2"])

    x_in = jnp.concatenate(
        [x_emb, jnp.broadcast_to(cf[:, None, :], (B, F, cond_dim))], axis=-1)

    w1 = jnp.concatenate([p["w1a"], p["w1b"]], axis=1)
    h1 = _silu(jnp.einsum("bfi,fio->bfo", x_in, w1) + p["b1"][:, 0, :][None])
    h2 = _silu(jnp.einsum("bfi,fio->bfo", h1, p["w2"]) + p["b2"][:, 0, :][None])

    logits = [h2[:, i] @ p["wp"][i, :, : p["n_classes"][i]]
              + p["bp"][i, 0, : p["n_classes"][i]] for i in range(F)]
    return logits


def argn_reference_matched(params, x, cond):
    """Pure-JAX mirror of the exact kernel math (folded weights, bf16 streaming/stores)."""
    p = params
    pk = p["packed"]
    F, E = p["num_features"], p["emb_dim"]
    B = x.shape[0]
    Fc = len(p["n_cond_classes"])
    wdt = pk["W1e"].dtype

    base = p["emb_table"][x + p["cat_offset"]].reshape(B, F * E).astype(ACT_DTYPE)
    cemb = p["cond_emb_table"][cond + p["cond_offset"]].reshape(B, Fc * E).astype(ACT_DTYPE)
    h = _silu(jnp.dot(cemb, pk["CM_W1"], preferred_element_type=jnp.float32) + pk["CM_B1"])
    cf = _silu(jnp.dot(h.astype(wdt), pk["CM_W2"], preferred_element_type=jnp.float32)
               + pk["CM_B2"]).astype(ACT_DTYPE)

    blocks = []
    for g in range(pk["G"]):
        h1 = _silu(jnp.dot(base, pk["W1e"][g], preferred_element_type=jnp.float32)
                   + jnp.dot(cf, pk["W1c"][g], preferred_element_type=jnp.float32)
                   + pk["B1"][g])
        h2 = _silu(jnp.dot(h1.astype(wdt), pk["W2"][g], preferred_element_type=jnp.float32)
                   + pk["B2"][g])
        blocks.append((jnp.dot(h2.astype(wdt), pk["WP"][g], preferred_element_type=jnp.float32)
                       + pk["BP"][g]).astype(LOGITS_DTYPE))
    out = jnp.concatenate(blocks, axis=-1)
    return out.reshape(B, pk["F_pad"], pk["Cpad"])[:, :F, :]


# ----------------------------------------------------------------------------
# Deterministic parameter construction (shapes per ARGN.__init__)
# ----------------------------------------------------------------------------
def make_params(key, n_classes, n_cond_classes, emb_dim, cond_dim, order_idx):
    F = len(n_classes)
    Fc = len(n_cond_classes)
    E = emb_dim
    in_dim = F * E + cond_dim
    Cmax = max(n_classes)
    ks = jax.random.split(key, 12)
    u = lambda k, shape, s: jax.random.uniform(k, shape, jnp.float32, -s, s)

    cat_offset = jnp.concatenate(
        [jnp.zeros((1,), jnp.int32), jnp.cumsum(jnp.array(n_classes, jnp.int32))[:-1]])
    cond_offset = jnp.concatenate(
        [jnp.zeros((1,), jnp.int32), jnp.cumsum(jnp.array(n_cond_classes, jnp.int32))[:-1]])

    mask = generate_mask(order_idx, F)                             # (F, F)
    mask_flat = jnp.repeat(mask, E, axis=1).astype(jnp.float32)    # (F, F*E)

    # NOTE: ARGN zero-inits cat_bias and the predictor heads; small deterministic
    # random values are used instead so the kernel output is non-trivial.
    wp = np.zeros((F, E, Cmax), np.float32)
    bp = np.zeros((F, 1, Cmax), np.float32)
    pk = jax.random.split(ks[11], 2 * F)
    for i, nc in enumerate(n_classes):
        wp[i, :, :nc] = np.asarray(u(pk[2 * i], (E, nc), E ** -0.5))
        bp[i, 0, :nc] = np.asarray(u(pk[2 * i + 1], (nc,), E ** -0.5))

    params = {
        "n_classes": n_classes,
        "n_cond_classes": n_cond_classes,
        "num_features": F,
        "emb_dim": E,
        "cat_offset": cat_offset,
        "cond_offset": cond_offset,
        "mask_flat": mask_flat.reshape(F, 1, F * E),
        "emb_table": jax.random.normal(ks[0], (sum(n_classes), E), jnp.float32),
        "cond_emb_table": jax.random.normal(ks[1], (sum(n_cond_classes), E), jnp.float32),
        "cat_bias": u(ks[2], (F, 1, F * E), 0.1),
        "cm_w1": u(ks[3], (Fc * E, cond_dim), (Fc * E) ** -0.5),
        "cm_b1": u(ks[4], (1, cond_dim), (Fc * E) ** -0.5),
        "cm_w2": u(ks[5], (cond_dim, cond_dim), cond_dim ** -0.5),
        "cm_b2": u(ks[6], (1, cond_dim), cond_dim ** -0.5),
        "w1a": u(ks[7], (F, F * E, 2 * E), in_dim ** -0.5),
        "w1b": u(ks[8], (F, cond_dim, 2 * E), in_dim ** -0.5),
        "b1": u(ks[9], (F, 1, 2 * E), in_dim ** -0.5),
        "w2": u(ks[10], (F, 2 * E, E), (2 * E) ** -0.5),
        "b2": u(jax.random.fold_in(ks[10], 1), (F, 1, E), (2 * E) ** -0.5),
        "wp": jnp.asarray(wp),
        "bp": jnp.asarray(bp),
    }
    hw = _tpu_hw_info()
    params["hw"] = hw
    params["packed"] = pack_processor_params(params, lane_target=hw["lane_target"])
    return params


if __name__ == "__main__":
    n_classes = [5, 3, 7, 4, 6, 2]    # 6 categorical features -> 2 feature groups (F_b=4)
    n_cond_classes = [3, 6]           # 2 conditioning features
    emb_dim = 8
    cond_dim = 128                    # module default; multiple of 128 -> lane-dense cond_map
    B = 32
    F = len(n_classes)

    key = jax.random.PRNGKey(0)
    k_p, k_x, k_c = jax.random.split(key, 3)
    order_idx = jnp.array([2, 0, 3, 1, 5, 4], dtype=jnp.int32)

    params = make_params(k_p, n_classes, n_cond_classes, emb_dim, cond_dim, order_idx)

    x = jnp.stack([jax.random.randint(jax.random.fold_in(k_x, i), (B,), 0, nc)
                   for i, nc in enumerate(n_classes)], axis=1).astype(jnp.int32)   # (B, F)
    cond = jnp.stack([jax.random.randint(jax.random.fold_in(k_c, i), (B,), 0, nc)
                      for i, nc in enumerate(n_cond_classes)], axis=1).astype(jnp.int32)  # (B, Fc)

    ref_m = np.asarray(argn_reference_matched(params, x, cond).astype(jnp.float32))
    ref = argn_reference(params, x, cond)

    # Exercise both the nb == 1 path (weights streamed once) and the nb > 1 path
    # (weights resident across inner batch tiles).
    for b_tile_override in (None, 16):
        padded = jax.block_until_ready(
            argn_forward(params, x, cond, b_tile_override=b_tile_override))   # (B, F, Cpad) bf16
        padded_f32 = np.asarray(padded.astype(jnp.float32))

        # (1) kernel vs a pure-JAX mirror of the exact folded/bf16 computation (tight check
        #     of the Pallas mechanics: BlockSpecs, grid order, tiling, stores).
        np.testing.assert_allclose(padded_f32, ref_m, rtol=1e-2, atol=1e-2)

        # (2) kernel vs the original unfolded f32 module math; tolerance covers bf16
        #     activation/weight streaming and the bf16 logit store (folds are exact).
        for i in range(F):
            logits_i = padded_f32[:, i, : n_classes[i]]
            assert logits_i.shape == (B, n_classes[i])
            np.testing.assert_allclose(logits_i, np.asarray(ref[i]),
                                       rtol=5e-2, atol=5e-2)

    print("KERNEL_OK")
</pallas_src>

<mosaic_0001>
module attributes {stable_mosaic.version = 11 : i64} {
  func.func @cond_map_kernel(%arg0: i32, %arg1: memref<32x16xbf16, #tpu.memory_space<vmem>>, %arg2: memref<16x128xbf16, #tpu.memory_space<vmem>>, %arg3: memref<1x128xf32, #tpu.memory_space<vmem>>, %arg4: memref<128x128xbf16, #tpu.memory_space<vmem>>, %arg5: memref<1x128xf32, #tpu.memory_space<vmem>>, %arg6: memref<32x128xbf16, #tpu.memory_space<vmem>>) attributes {dimension_semantics = [#tpu.dimension_semantics<parallel>], iteration_bounds = array<i64: 1>, scalar_prefetch = 0 : i64, scratch_operands = 0 : i64, tpu.core_type = #tpu.core_type<tc>, window_params = [{transform_indices = @transform_0, window_bounds = array<i64: 32, 16>}, {pipeline_mode = #tpu.pipeline_mode<synchronous>, transform_indices = @transform_1, window_bounds = array<i64: 16, 128>}, {pipeline_mode = #tpu.pipeline_mode<synchronous>, transform_indices = @transform_2, window_bounds = array<i64: 1, 128>}, {pipeline_mode = #tpu.pipeline_mode<synchronous>, transform_indices = @transform_3, window_bounds = array<i64: 128, 128>}, {pipeline_mode = #tpu.pipeline_mode<synchronous>, transform_indices = @transform_4, window_bounds = array<i64: 1, 128>}, {transform_indices = @transform_5, window_bounds = array<i64: 32, 128>}]} {
    %c0 = arith.constant 0 : index
    %c0_0 = arith.constant 0 : index
    %0 = vector.load %arg1[%c0, %c0_0] : memref<32x16xbf16, #tpu.memory_space<vmem>>, vector<32x16xbf16>
    %c0_1 = arith.constant 0 : index
    %c0_2 = arith.constant 0 : index
    %1 = vector.load %arg2[%c0_1, %c0_2] : memref<16x128xbf16, #tpu.memory_space<vmem>>, vector<16x128xbf16>
    %cst = arith.constant dense<0.000000e+00> : vector<32x128xf32>
    %2 = tpu.matmul %0, %1, %cst {dimension_numbers = #tpu.dot_dimension_numbers<[1], [0], [0], [1], [0, 0, 1, 1], [], []>} : vector<32x16xbf16>, vector<16x128xbf16>, vector<32x128xf32> -> vector<32x128xf32>
    %c0_3 = arith.constant 0 : index
    %c0_4 = arith.constant 0 : index
    %3 = vector.load %arg3[%c0_3, %c0_4] : memref<1x128xf32, #tpu.memory_space<vmem>>, vector<1x128xf32>
    %4 = vector.broadcast %3 : vector<1x128xf32> to vector<32x128xf32>
    %5 = arith.addf %2, %4 : vector<32x128xf32>
    %6 = arith.negf %5 : vector<32x128xf32>
    %7 = math.exp %6 : vector<32x128xf32>
    %cst_5 = arith.constant 1.000000e+00 : f32
    %8 = vector.broadcast %cst_5 : f32 to vector<32x128xf32>
    %9 = arith.addf %8, %7 : vector<32x128xf32>
    %10 = arith.divf %8, %9 : vector<32x128xf32>
    %11 = arith.mulf %5, %10 : vector<32x128xf32>
    %12 = arith.truncf %11 : vector<32x128xf32> to vector<32x128xbf16>
    %c0_6 = arith.constant 0 : index
    %c0_7 = arith.constant 0 : index
    %13 = vector.load %arg4[%c0_6, %c0_7] : memref<128x128xbf16, #tpu.memory_space<vmem>>, vector<128x128xbf16>
    %cst_8 = arith.constant dense<0.000000e+00> : vector<32x128xf32>
    %14 = tpu.matmul %12, %13, %cst_8 {dimension_numbers = #tpu.dot_dimension_numbers<[1], [0], [0], [1], [0, 0, 1, 1], [], []>} : vector<32x128xbf16>, vector<128x128xbf16>, vector<32x128xf32> -> vector<32x128xf32>
    %c0_9 = arith.constant 0 : index
    %c0_10 = arith.constant 0 : index
    %15 = vector.load %arg5[%c0_9, %c0_10] : memref<1x128xf32, #tpu.memory_space<vmem>>, vector<1x128xf32>
    %16 = vector.broadcast %15 : vector<1x128xf32> to vector<32x128xf32>
    %17 = arith.addf %14, %16 : vector<32x128xf32>
    %18 = arith.negf %17 : vector<32x128xf32>
    %19 = math.exp %18 : vector<32x128xf32>
    %cst_11 = arith.constant 1.000000e+00 : f32
    %20 = vector.broadcast %cst_11 : f32 to vector<32x128xf32>
    %21 = arith.addf %20, %19 : vector<32x128xf32>
    %22 = arith.divf %20, %21 : vector<32x128xf32>
    %23 = arith.mulf %17, %22 : vector<32x128xf32>
    %24 = arith.truncf %23 : vector<32x128xf32> to vector<32x128xbf16>
    %c0_12 = arith.constant 0 : index
    %c0_13 = arith.constant 0 : index
    %25 = vector.load %arg6[%c0_12, %c0_13] : memref<32x128xbf16, #tpu.memory_space<vmem>>, vector<32x128xbf16>
    tpu.vector_store %arg6[%c0_12, %c0_13], %24 {strides = array<i32>} : memref<32x128xbf16, #tpu.memory_space<vmem>>, vector<32x128xbf16>,
    return
  }
  func.func @transform_0(%arg0: i32) -> (i32, i32) {
    %c0_i32 = arith.constant 0 : i32
    %c0_i32_0 = arith.constant 0 : i32
    return %arg0, %c0_i32 : i32, i32
  }
  func.func @transform_1(%arg0: i32) -> (i32, i32) {
    %c0_i32 = arith.constant 0 : i32
    %c0_i32_0 = arith.constant 0 : i32
    %c0_i32_1 = arith.constant 0 : i32
    return %c0_i32, %c0_i32_0 : i32, i32
  }
  func.func @transform_2(%arg0: i32) -> (i32, i32) {
    %c0_i32 = arith.constant 0 : i32
    %c0_i32_0 = arith.constant 0 : i32
    %c0_i32_1 = arith.constant 0 : i32
    return %c0_i32, %c0_i32_0 : i32, i32
  }
  func.func @transform_3(%arg0: i32) -> (i32, i32) {
    %c0_i32 = arith.constant 0 : i32
    %c0_i32_0 = arith.constant 0 : i32
    %c0_i32_1 = arith.constant 0 : i32
    return %c0_i32, %c0_i32_0 : i32, i32
  }
  func.func @transform_4(%arg0: i32) -> (i32, i32) {
    %c0_i32 = arith.constant 0 : i32
    %c0_i32_0 = arith.constant 0 : i32
    %c0_i32_1 = arith.constant 0 : i32
    return %c0_i32, %c0_i32_0 : i32, i32
  }
  func.func @transform_5(%arg0: i32) -> (i32, i32) {
    %c0_i32 = arith.constant 0 : i32
    %c0_i32_0 = arith.constant 0 : i32
    return %arg0, %c0_i32 : i32, i32
  }
}

</mosaic_0001>

<llo_original>
// kernel: tpu_custom_call.1
$region0: #{tpu_custom_call.1}
  #allocation0 [shape = 'u32[]', space=smem, size = 0x4, offset = 0x4, fixed_abs, tag = 'smem constant byte address 0x4 - core index']
  #allocation1 [shape = 'u32[144,128]{1,0:T(1,128)}', space=vmem, size = 0x12000, scoped, tag = 'internal scratch']
  %s0 = inlined_call_operand.vmem [shape: bf16[32,16], index: 0, kind: input, shape index: {}]
  %s1 = inlined_call_operand.vmem [shape: bf16[16,128], index: 1, kind: input, shape index: {}]
  %s2 = inlined_call_operand.vmem [shape: f32[1,128], index: 2, kind: input, shape index: {}]
  %s3 = inlined_call_operand.hbm [shape: bf16[128,128], index: 3, kind: input, shape index: {}]
  %s4 = inlined_call_operand.vmem [shape: f32[1,128], index: 4, kind: input, shape index: {}]
  %s5 = inlined_call_operand.hbm [shape: bf16[32,128], index: 5, kind: output, shape index: {}]
  %s6 = sld [smem:[#allocation0]]
  $region34: #{tpu_custom_call.1} parent=0
    _
  %s8 = ssub.s32 1, %s6
  %s9 = scalar_select 0, %s8, %s6
  $region1: #{tpu_custom_call.1} parent=0
    #allocation2 [shape = 'u8[32768]{0}', space=vmem, size = 0x8000, scoped, tag = 'input window, operand 3, single buffered']
    #allocation3 [shape = 's32[1]{0}', space=sflag, size = 0x4, scoped, tag = 'scoped memory for tpu_custom_call.1']
    #allocation4 [shape = 's32[1]{0}', space=sflag, size = 0x4, scoped, tag = 'scoped memory for tpu_custom_call.1']
    #allocation5 [shape = 'u8[8192]{0}', space=vmem, size = 0x2000, scoped, tag = 'output window, operand 0, single buffered']
    %10 = vsyncpa [#allocation3], 0
    %11 = vsyncpa [#allocation4], 0
    // Predicated region
    $region2: #{tpu_custom_call.1} parent=1 // pred_check
      _
    $region3: #{tpu_custom_call.1} parent=1 // pred_check_branch
      %13 = sbr.rel (0) target = $region5
    $region4: #{tpu_custom_call.1} parent=1 // pred_region
      _
    $region5: #{tpu_custom_call.1} parent=1 // pred_fallthru
      _
    // Predicated region
    $region6: #{tpu_custom_call.1} parent=1 // pred_check
      _
    $region7: #{tpu_custom_call.1} parent=1 // pred_check_branch
      %15 = sbr.rel (0) target = $region9
    $region8: #{tpu_custom_call.1} parent=1 // pred_region
      _
    $region9: #{tpu_custom_call.1} parent=1 // pred_fallthru
      _
    // Predicated region
    $region10: #{tpu_custom_call.1} parent=1 // pred_check
      _
    $region11: #{tpu_custom_call.1} parent=1 // pred_check_branch
      %17 = sbr.rel (0) target = $region13
    $region12: #{tpu_custom_call.1} parent=1 // pred_region
      _
    $region13: #{tpu_custom_call.1} parent=1 // pred_fallthru
      _
    // Predicated region
    $region14: #{tpu_custom_call.1} parent=1 // pred_check
      _
    $region15: #{tpu_custom_call.1} parent=1 // pred_check_branch
      %19 = sbr.rel (0) target = $region17
    $region16: #{tpu_custom_call.1} parent=1 // pred_region
      %s21 = ssub.s32 1024, 1024
      %22 = vsyncadd [#allocation3], %s21
      %s23 = sshll.u32 [#allocation2], 4
      %s24 = int_to_ptr.vmem [resolvable:$true] %s23
      %29 = dma.hbm_to_vmem [thread:$0]  %s3, 1024, %s24, [#allocation3], 64, 64, 4
    $region17: #{tpu_custom_call.1} parent=1 // pred_fallthru
      _
    // Predicated region
    $region18: #{tpu_custom_call.1} parent=1 // pred_check
      _
    $region19: #{tpu_custom_call.1} parent=1 // pred_check_branch
      %31 = sbr.rel (0) target = $region21
    $region20: #{tpu_custom_call.1} parent=1 // pred_region
      _
    $region21: #{tpu_custom_call.1} parent=1 // pred_fallthru
      _
    // Predicated region
    $region22: #{tpu_custom_call.1} parent=1 // pred_check
      _
    $region23: #{tpu_custom_call.1} parent=1 // pred_check_branch
      %33 = sbr.rel (0) target = $region25
    $region24: #{tpu_custom_call.1} parent=1 // pred_region
      %34 = dma.done [#allocation3], 1024
    $region25: #{tpu_custom_call.1} parent=1 // pred_fallthru
      _
    %v36 = vld [vmem:[%s0] sm:$0xf]
    %v37 = vld [vmem:[%s0 + $0x4] sm:$0xf]
    %v38 = vld [vmem:[%s0 + $0x8] sm:$0xf]
    %v39 = vld [vmem:[%s0 + $0xc] sm:$0xf]
    %v40 = vld [vmem:[%s1] sm:$0xf]
    %v41 = vld [vmem:[%s1 + $0x4] sm:$0xf]
    %v42 = vld [vmem:[%s2] sm:$0x1]
    %v44 = vlaneseq
    %v45 = vshrl.u32 %v44, 7
    %v46 = vsub.s32 0, %v45
    %v47 = vrot.slane %v42, %v46
    %v53 = vunpack.c.l.b16 %v36
    %v54 = vunpack.c.l.b16 %v37
    %v55 = vunpack.c.l.b16 %v38
    %v56 = vunpack.c.l.b16 %v39
    %v57 = vpack.c.b16 %v54, %v53
    %v58 = vpack.c.b16 %v56, %v55
    %v61 = vunpack.c.l.b16 %v40
    %v62 = vunpack.c.l.b16 %v41
    %v63 = vpack.c.b16 %v62, %v61
    %vm65 = vcmask 130048
    %v67 = vsel %vm65, %v57, 0
    %v70 = vsel %vm65, %v58, 0
    %72 = vmatprep.subr.bf16.mxu0 0
    %73 = vmatpush1.bf16.msra.mxu0 %v63
    %74 = vmatprep.subr.bf16.mxu0 0
    %75 = vmatpush1.bf16.msra.mxu0 0
    %76 = vmatprep.subr.bf16.mxu0 0
    %77 = vmatpush1.bf16.msra.mxu0 0
    %78 = vmatprep.subr.bf16.mxu0 0
    %79 = vmatpush1.bf16.msra.mxu0 0
    %80 = vmatprep.subr.bf16.mxu0 0
    %81 = vmatpush1.bf16.msra.mxu0 0
    %82 = vmatprep.subr.bf16.mxu0 0
    %83 = vmatpush1.bf16.msra.mxu0 0
    %84 = vmatprep.subr.bf16.mxu0 0
    %85 = vmatpush1.bf16.msra.mxu0 0
    %86 = vmatprep.subr.bf16.mxu0 0
    %87 = vmatpush1.bf16.msra.mxu0 0
    %88 = vmatprep.subr.bf16.mxu0 0
    %89 = vmatpush1.bf16.msra.mxu0 0
    %90 = vmatprep.subr.bf16.mxu0 0
    %91 = vmatpush1.bf16.msra.mxu0 0
    %92 = vmatprep.subr.bf16.mxu0 0
    %93 = vmatpush1.bf16.msra.mxu0 0
    %94 = vmatprep.subr.bf16.mxu0 0
    %95 = vmatpush1.bf16.msra.mxu0 0
    %96 = vmatprep.subr.bf16.mxu0 0
    %97 = vmatpush1.bf16.msra.mxu0 0
    %98 = vmatprep.subr.bf16.mxu0 0
    %99 = vmatpush1.bf16.msra.mxu0 0
    %100 = vmatprep.subr.bf16.mxu0 0
    %101 = vmatpush1.bf16.msra.mxu0 0
    %102 = vmatprep.subr.bf16.mxu0 0
    %103 = vmatpush1.bf16.msra.mxu0 0
    %104 = vmatprep.mubr.bf16.mxu0 0
    %105 = vmatmul.mubr.bf16.gmra.mrb[0].mxu0 %v67
    %v106 = vpop.f32.mrb[0].mxu0
    %v107 = vadd.f32 %v47, %v106
    %v108 = vpop.f32.mrb[0].mxu0
    %v109 = vpop.f32.mrb[0].mxu0
    %v110 = vadd.f32 %v47, %v109
    %v111 = vpop.f32.mrb[0].mxu0
    %112 = vmatprep.mubr.bf16.mxu0 0
    %113 = vmatmul.mubr.bf16.gmra.mrb[0].mxu0 %v70
    %v114 = vpop.f32.mrb[0].mxu0
    %v115 = vadd.f32 %v47, %v114
    %v116 = vpop.f32.mrb[0].mxu0
    %v117 = vpop.f32.mrb[0].mxu0
    %v118 = vadd.f32 %v47, %v117
    %v119 = vpop.f32.mrb[0].mxu0
    %120 = vdwg.mxu0
    %v121 = vxor.u32 %v107, 2147483648
    %v122 = vxor.u32 %v110, 2147483648
    %v123 = vxor.u32 %v115, 2147483648
    %v124 = vxor.u32 %v118, 2147483648
    %v125 = vmul.f32 %v121, 1.442695
    %v126 = vpow.pop %v125
    %v127 = vmul.f32 %v122, 1.442695
    %v128 = vpow.pop %v127
    %v129 = vmul.f32 %v123, 1.442695
    %v130 = vpow.pop %v129
    %v131 = vmul.f32 %v124, 1.442695
    %v132 = vpow.pop %v131
    %v133 = vadd.f32 %v126, 1.0
    %v134 = vadd.f32 %v128, 1.0
    %v135 = vadd.f32 %v130, 1.0
    %v136 = vadd.f32 %v132, 1.0
    %v137 = vrcp.pop %v133
    %v138 = vmul.f32 1.0, %v137
    %v139 = vrcp.pop %v134
    %v140 = vmul.f32 1.0, %v139
    %v141 = vrcp.pop %v135
    %v142 = vmul.f32 1.0, %v141
    %v143 = vrcp.pop %v136
    %v144 = vmul.f32 1.0, %v143
    %v145 = vmul.f32 %v107, %v138
    %v146 = vmul.f32 %v110, %v140
    %v147 = vmul.f32 %v115, %v142
    %v148 = vmul.f32 %v118, %v144
    %v149 = vpack.c.bf16 %v146, %v145
    %v150 = vpack.c.bf16 %v148, %v147
    %v151 = vld [vmem:[#allocation2] sm:$0xf]
    %v152 = vld [vmem:[#allocation2 + $0x4] sm:$0xf]
    %v153 = vld [vmem:[#allocation2 + $0x8] sm:$0xf]
    %v154 = vld [vmem:[#allocation2 + $0xc] sm:$0xf]
    %v155 = vld [vmem:[#allocation2 + $0x10] sm:$0xf]
    %v156 = vld [vmem:[#allocation2 + $0x14] sm:$0xf]
    %v157 = vld [vmem:[#allocation2 + $0x18] sm:$0xf]
    %v158 = vld [vmem:[#allocation2 + $0x1c] sm:$0xf]
    %v159 = vld [vmem:[#allocation2 + $0x20] sm:$0xf]
    %v160 = vld [vmem:[#allocation2 + $0x24] sm:$0xf]
    %v161 = vld [vmem:[#allocation2 + $0x28] sm:$0xf]
    %v162 = vld [vmem:[#allocation2 + $0x2c] sm:$0xf]
    %v163 = vld [vmem:[#allocation2 + $0x30] sm:$0xf]
    %v164 = vld [vmem:[#allocation2 + $0x34] sm:$0xf]
    %v165 = vld [vmem:[#allocation2 + $0x38] sm:$0xf]
    %v166 = vld [vmem:[#allocation2 + $0x3c] sm:$0xf]
    %v167 = vld [vmem:[%s4] sm:$0x1]
    %v169 = vlaneseq
    %v170 = vshrl.u32 %v169, 7
    %v171 = vsub.s32 0, %v170
    %v172 = vrot.slane %v167, %v171
    %v190 = vunpack.c.l.b16 %v151
    %v191 = vunpack.c.l.b16 %v152
    %v192 = vunpack.c.l.b16 %v153
    %v193 = vunpack.c.l.b16 %v154
    %v194 = vunpack.c.l.b16 %v155
    %v195 = vunpack.c.l.b16 %v156
    %v196 = vunpack.c.l.b16 %v157
    %v197 = vunpack.c.l.b16 %v158
    %v198 = vunpack.c.l.b16 %v159
    %v199 = vunpack.c.l.b16 %v160
    %v200 = vunpack.c.l.b16 %v161
    %v201 = vunpack.c.l.b16 %v162
    %v202 = vunpack.c.l.b16 %v163
    %v203 = vunpack.c.l.b16 %v164
    %v204 = vunpack.c.l.b16 %v165
    %v205 = vunpack.c.l.b16 %v166
    %v206 = vpack.c.b16 %v191, %v190
    %v207 = vpack.c.b16 %v193, %v192
    %v208 = vpack.c.b16 %v195, %v194
    %v209 = vpack.c.b16 %v197, %v196
    %v210 = vpack.c.b16 %v199, %v198
    %v211 = vpack.c.b16 %v201, %v200
    %v212 = vpack.c.b16 %v203, %v202
    %v213 = vpack.c.b16 %v205, %v204
    %222 = vmatprep.subr.bf16.mxu0 0
    %223 = vmatpush1.bf16.msra.mxu0 %v206
    %224 = vmatprep.subr.bf16.mxu0 0
    %225 = vmatpush1.bf16.msra.mxu0 %v207
    %226 = vmatprep.subr.bf16.mxu0 0
    %227 = vmatpush1.bf16.msra.mxu0 %v208
    %228 = vmatprep.subr.bf16.mxu0 0
    %229 = vmatpush1.bf16.msra.mxu0 %v209
    %230 = vmatprep.subr.bf16.mxu0 0
    %231 = vmatpush1.bf16.msra.mxu0 %v210
    %232 = vmatprep.subr.bf16.mxu0 0
    %233 = vmatpush1.bf16.msra.mxu0 %v211
    %234 = vmatprep.subr.bf16.mxu0 0
    %235 = vmatpush1.bf16.msra.mxu0 %v212
    %236 = vmatprep.subr.bf16.mxu0 0
    %237 = vmatpush1.bf16.msra.mxu0 %v213
    %238 = vmatprep.subr.bf16.mxu0 0
    %239 = vmatpush1.bf16.msra.mxu0 0
    %240 = vmatprep.subr.bf16.mxu0 0
    %241 = vmatpush1.bf16.msra.mxu0 0
    %242 = vmatprep.subr.bf16.mxu0 0
    %243 = vmatpush1.bf16.msra.mxu0 0
    %244 = vmatprep.subr.bf16.mxu0 0
    %245 = vmatpush1.bf16.msra.mxu0 0
    %246 = vmatprep.subr.bf16.mxu0 0
    %247 = vmatpush1.bf16.msra.mxu0 0
    %248 = vmatprep.subr.bf16.mxu0 0
    %249 = vmatpush1.bf16.msra.mxu0 0
    %250 = vmatprep.subr.bf16.mxu0 0
    %251 = vmatpush1.bf16.msra.mxu0 0
    %252 = vmatprep.subr.bf16.mxu0 0
    %253 = vmatpush1.bf16.msra.mxu0 0
    %254 = vmatprep.mubr.bf16.mxu0 0
    %255 = vmatmul.mubr.bf16.gmra.mrb[0].mxu0 %v149
    %v256 = vpop.f32.mrb[0].mxu0
    %v257 = vadd.f32 %v172, %v256
    %v258 = vpop.f32.mrb[0].mxu0
    %v259 = vpop.f32.mrb[0].mxu0
    %v260 = vadd.f32 %v172, %v259
    %v261 = vpop.f32.mrb[0].mxu0
    %262 = vmatprep.mubr.bf16.mxu0 0
    %263 = vmatmul.mubr.bf16.gmra.mrb[0].mxu0 %v150
    %v264 = vpop.f32.mrb[0].mxu0
    %v265 = vadd.f32 %v172, %v264
    %v266 = vpop.f32.mrb[0].mxu0
    %v267 = vpop.f32.mrb[0].mxu0
    %v268 = vadd.f32 %v172, %v267
    %v269 = vpop.f32.mrb[0].mxu0
    %270 = vdwg.mxu0
    %v271 = vxor.u32 %v257, 2147483648
    %v272 = vxor.u32 %v260, 2147483648
    %v273 = vxor.u32 %v265, 2147483648
    %v274 = vxor.u32 %v268, 2147483648
    %v275 = vmul.f32 %v271, 1.442695
    %v276 = vpow.pop %v275
    %v277 = vmul.f32 %v272, 1.442695
    %v278 = vpow.pop %v277
    %v279 = vmul.f32 %v273, 1.442695
    %v280 = vpow.pop %v279
    %v281 = vmul.f32 %v274, 1.442695
    %v282 = vpow.pop %v281
    %v283 = vadd.f32 %v276, 1.0
    %v284 = vadd.f32 %v278, 1.0
    %v285 = vadd.f32 %v280, 1.0
    %v286 = vadd.f32 %v282, 1.0
    %v287 = vrcp.pop %v283
    %v288 = vmul.f32 1.0, %v287
    %v289 = vrcp.pop %v284
    %v290 = vmul.f32 1.0, %v289
    %v291 = vrcp.pop %v285
    %v292 = vmul.f32 1.0, %v291
    %v293 = vrcp.pop %v286
    %v294 = vmul.f32 1.0, %v293
    %v295 = vmul.f32 %v257, %v288
    %v296 = vmul.f32 %v260, %v290
    %v297 = vmul.f32 %v265, %v292
    %v298 = vmul.f32 %v268, %v294
    %v299 = vpack.c.bf16 %v296, %v295
    %v300 = vpack.c.bf16 %v298, %v297
    %v303 = vunpack.c.l.b16 %v299
    %v304 = vunpack.c.h.b16 %v299
    %v305 = vunpack.c.l.b16 %v300
    %v306 = vunpack.c.h.b16 %v300
    %v307 = vpack.c.b16 %v303, %v303
    %v308 = vpack.c.b16 %v304, %v304
    %v309 = vpack.c.b16 %v305, %v305
    %v310 = vpack.c.b16 %v306, %v306
    %315 = vst [vmem:[#allocation5] sm:$0xf] %v307
    %316 = vst [vmem:[#allocation5 + $0x4] sm:$0xf] %v308
    %317 = vst [vmem:[#allocation5 + $0x8] sm:$0xf] %v309
    %318 = vst [vmem:[#allocation5 + $0xc] sm:$0xf] %v310
    // Predicated region
    $region26: #{tpu_custom_call.1} parent=1 // pred_check
      _
    $region27: #{tpu_custom_call.1} parent=1 // pred_check_branch
      %320 = sbr.rel (0) target = $region29
    $region28: #{tpu_custom_call.1} parent=1 // pred_region
      %s322 = ssub.s32 256, 256
      %323 = vsyncadd [#allocation4], %s322
      %s324 = sshll.u32 [#allocation5], 4
      %s325 = int_to_ptr.vmem [resolvable:$true] %s324
      %330 = dma.vmem_to_hbm [thread:$0]  %s325, 256, %s5, [#allocation4], 64, 64, 4
    $region29: #{tpu_custom_call.1} parent=1 // pred_fallthru
      _
    // Predicated region
    $region30: #{tpu_custom_call.1} parent=1 // pred_check
      _
    $region31: #{tpu_custom_call.1} parent=1 // pred_check_branch
      %332 = sbr.rel (0) target = $region33
    $region32: #{tpu_custom_call.1} parent=1 // pred_region
      %333 = dma.done [#allocation4], 256
    $region33: #{tpu_custom_call.1} parent=1 // pred_fallthru
      _
    %334 = vsyncpa [#allocation3], 1
    %335 = vsyncpa [#allocation4], 1

</llo_original>
